<compile_context>
chip_gen: v7x
topology: tpu7x:2x2x1
jax: 0.10.0
libtpu: 0.0.40
codegen_flags: <defaults>
</compile_context>

<pallas_src>
import functools

import jax
import jax.numpy as jnp
from jax.experimental import pallas as pl
from jax.experimental.pallas import tpu as pltpu

F32 = jnp.float32
LN_EPS = 1e-5  # torch nn.LayerNorm default


# --------------------------------------------------------------------------- kernels
def msa_kernel(msa_ref, seq_ref, pos1d_ref, wm_ref, ws_ref, wp_ref, bsum_ref,
               *rest, first):
    """m[tile] = msa @ Wm + (seq @ Ws + pos1d @ Wp + b_sum)  (+ LN(m1_pre) on MSA row 0)."""
    if first:
        (m_out_ref,) = rest
    else:
        m1pre_ref, gm_ref, bm_ref, m_out_ref = rest
    TN, L, K = msa_ref.shape
    M = wm_ref.shape[1]

    # per-residue terms, computed once per tile (not once per MSA row)
    sp = (jnp.dot(seq_ref[...], ws_ref[...], preferred_element_type=jnp.float32)
          + jnp.dot(pos1d_ref[...], wp_ref[...], preferred_element_type=jnp.float32)
          + bsum_ref[...])                                                   # (L, M)

    x = msa_ref[...].reshape(TN * L, K)                                      # leading-dim merge (free)
    m = jnp.dot(x, wm_ref[...], preferred_element_type=jnp.float32).reshape(TN, L, M)
    m_out_ref[...] = m + sp[None, :, :]

    if not first:
        @pl.when(pl.program_id(0) == 0)        # RecyclingEmbedder m1_ only touches MSA row 0
        def _():
            x1 = m1pre_ref[...]
            mu = jnp.mean(x1, axis=-1, keepdims=True)
            var = jnp.mean((x1 - mu) ** 2, axis=-1, keepdims=True)
            m1 = (x1 - mu) * jax.lax.rsqrt(var + LN_EPS) * gm_ref[...] + bm_ref[...]
            m_out_ref[0] = m_out_ref[0] + m1


def pair_kernel(seq_a_ref, seq_ref, cb_a_ref, cb_ref, ss_ref,
                wq_ref, wk_ref, wpos_ref, wss_ref, wsc_ref, wself_ref,
                bpair_ref, inv_scales_ref, *rest, first):
    """One tile of TA 'a'-rows of the pair tensor, flattened to (TA*L, z) pair-rows."""
    if first:
        (z_out_ref,) = rest
    else:
        zpre_ref, gz_ref, bz_ref, z_out_ref = rest
    TA = seq_a_ref.shape[0]
    L = seq_ref.shape[0]
    Z = wq_ref.shape[1]
    a0 = pl.program_id(0) * TA

    # qlinear / klinear outer sum:  z[a, b] = sk[a] + sq[b]
    sq = jnp.dot(seq_ref[...], wq_ref[...], preferred_element_type=jnp.float32)    # (L, Z)
    sk = jnp.dot(seq_a_ref[...], wk_ref[...], preferred_element_type=jnp.float32)  # (TA, Z)
    z = (sk[:, None, :] + sq[None, :, :]).reshape(TA * L, Z)

    # relative-position term: one-hot built in VMEM (no (L*L, 65) HBM read), then MXU matmul
    ai = a0 + jax.lax.broadcasted_iota(jnp.int32, (TA, L, 65), 0)
    bi = jax.lax.broadcasted_iota(jnp.int32, (TA, L, 65), 1)
    ki = jax.lax.broadcasted_iota(jnp.int32, (TA, L, 65), 2)
    rel = jnp.clip(bi - ai, -32, 32) + 32
    onehot = (rel == ki).astype(jnp.float32).reshape(TA * L, 65)
    z = z + jnp.dot(onehot, wpos_ref[...], preferred_element_type=jnp.float32)

    # pre_z(ss_): Linear(1, z)
    z = z + ss_ref[...] * wss_ref[...]

    # RecyclingEmbedder: fourier-encoded CB-CB distances, computed in-kernel from (L, 3) coords
    diff = cb_a_ref[...][:, None, :] - cb_ref[...][None, :, :]                      # (TA, L, 3)
    dis = jnp.sqrt(jnp.sum(diff * diff, axis=-1, keepdims=True)).reshape(TA * L, 1)
    d = dis * inv_scales_ref[...]                                                   # (TA*L, 64)
    sincos = jnp.concatenate([jnp.sin(d), jnp.cos(d)], axis=-1)                     # (TA*L, 128)
    z = z + jnp.dot(sincos, wsc_ref[...], preferred_element_type=jnp.float32)
    z = z + dis * wself_ref[...]

    if not first:  # recycling LayerNorm(z_pre); branch (and its HBM read) absent on cycle 0
        x = zpre_ref[...]
        mu = jnp.mean(x, axis=-1, keepdims=True)
        var = jnp.mean((x - mu) ** 2, axis=-1, keepdims=True)
        z = z + (x - mu) * jax.lax.rsqrt(var + LN_EPS) * gz_ref[...] + bz_ref[...]

    z_out_ref[...] = z + bpair_ref[...]      # all constant biases pre-summed into one vector


def linear_kernel(x_ref, w_ref, b_ref, o_ref):
    o_ref[...] = jnp.dot(x_ref[...], w_ref[...], preferred_element_type=jnp.float32) + b_ref[...]


# --------------------------------------------------------------------------- tiling helpers
def _pick_msa_tile(N, L, msa_dim, max_bytes=512 * 1024):
    fitting = [t for t in range(1, N + 1) if N % t == 0 and t * L * msa_dim * 4 <= max_bytes]
    return max(fitting) if fitting else 1


def _pick_a_tile(L, max_rows=1024):
    valid = [t for t in range(1, L + 1) if L % t == 0 and (t == L or t % 8 == 0)]
    fitting = [t for t in valid if t * L <= max_rows]
    return max(fitting) if fitting else min(valid)


# --------------------------------------------------------------------------- params
def init_params(key, seq_dim, msa_dim, m_dim, z_dim, s_dim, dis_encoding_dim=64):
    ks = jax.random.split(key, 11)

    def lin(k, fan_in, fan_out):
        kw, kb = jax.random.split(k)
        w = jax.random.normal(kw, (fan_in, fan_out), F32) * (1.0 / jnp.sqrt(float(fan_in)))
        b = jax.random.normal(kb, (1, fan_out), F32) * 0.01
        return w, b

    p = {}
    p["msalinear"] = lin(ks[0], msa_dim, m_dim)                    # PreMSA.msalinear
    p["qlinear"] = lin(ks[1], seq_dim, z_dim)                      # PreMSA.qlinear
    p["klinear"] = lin(ks[2], seq_dim, z_dim)                      # PreMSA.klinear
    p["slinear_pre"] = lin(ks[3], seq_dim, m_dim)                  # PreMSA.slinear
    p["poslinear"] = lin(ks[4], 65, z_dim)                         # PreMSA.poslinear
    p["poslinear2"] = lin(ks[5], 14, m_dim)                        # PreMSA.poslinear2
    p["pre_z"] = lin(ks[6], 1, z_dim)                              # MSA2xyzIteration.pre_z
    p["re_linear"] = lin(ks[7], 2 * dis_encoding_dim + 1, z_dim)   # RecyclingEmbedder.linear
    p["slinear"] = lin(ks[8], z_dim, s_dim)                        # applied to m[0]; m_dim == z_dim
    kz1, kz2 = jax.random.split(ks[9])
    km1, km2 = jax.random.split(ks[10])
    p["normz"] = (1.0 + 0.1 * jax.random.normal(kz1, (1, z_dim), F32),
                  0.1 * jax.random.normal(kz2, (1, z_dim), F32))
    p["normm"] = (1.0 + 0.1 * jax.random.normal(km1, (1, m_dim), F32),
                  0.1 * jax.random.normal(km2, (1, m_dim), F32))
    return p


# --------------------------------------------------------------------------- forward
def msa2xyz_iteration_forward(params, msa_, ss_, m1_pre, z_pre, pre_x, cycle_index,
                              dis_encoding_dim=64, msa_row_tile=None, pair_a_tile=None):
    N, L, seq_dim = msa_.shape
    msa_dim = seq_dim + 1
    D = dis_encoding_dim

    wm, bm_l = params["msalinear"]
    m_dim = wm.shape[1]
    wq, bq = params["qlinear"]
    z_dim = wq.shape[1]
    wk, bk = params["klinear"]
    ws, bs = params["slinear_pre"]
    wp2, bp2 = params["poslinear2"]
    wpos, bpos = params["poslinear"]
    wss, bss = params["pre_z"]
    wdis, bdis = params["re_linear"]
    gz, bz = params["normz"]
    gm, bmn = params["normm"]
    wsl, bsl = params["slinear"]
    s_dim = wsl.shape[1]

    first = bool(cycle_index == 0)   # drives a Python `if` in torch, so it is static here

    # ---- glue: cheap O(L) setup done once; all O(N*L) / O(L^2) work stays in Pallas ----
    msa_mask = jnp.zeros((N, L), F32)
    msa_true = msa_.astype(F32)
    seq = msa_true[0]
    msa_aug = jnp.concatenate(
        [msa_true * (1.0 - msa_mask[:, :, None]), msa_mask[:, :, None]], axis=-1)   # (N, L, msa_dim)

    idx = jnp.arange(L)
    pos1d = ((idx[:, None] & (1 << jnp.arange(14))) > 0).astype(F32)                # (L, 14)
    cb = pre_x[:, -1].astype(F32)                                                   # (L, 3)
    ss_flat = ss_.astype(F32).reshape(L * L, 1)

    # parameter prep: pre-summed biases, stacked sin|cos weight, reciprocal scales
    b_msa = bm_l + bs + bp2
    b_pair = bq + bk + bpos + bss + bdis
    wsc = wdis[:2 * D]                        # fourier_encode_dist order: [sin | cos | self]
    wself = wdis[2 * D:]
    inv_scales = (1.0 / (2.0 ** jnp.arange(D, dtype=F32))).reshape(1, D)

    # ---- kernel 1: MSA representation, tiled over MSA rows ----
    TN = msa_row_tile if msa_row_tile is not None else _pick_msa_tile(N, L, msa_dim)
    assert N % TN == 0
    in_specs1 = [
        pl.BlockSpec((TN, L, msa_dim), lambda i: (i, 0, 0)),
        pl.BlockSpec((L, seq_dim), lambda i: (0, 0)),
        pl.BlockSpec((L, 14), lambda i: (0, 0)),
        pl.BlockSpec((msa_dim, m_dim), lambda i: (0, 0)),
        pl.BlockSpec((seq_dim, m_dim), lambda i: (0, 0)),
        pl.BlockSpec((14, m_dim), lambda i: (0, 0)),
        pl.BlockSpec((1, m_dim), lambda i: (0, 0)),
    ]
    args1 = [msa_aug, seq, pos1d, wm, ws, wp2, b_msa]
    if not first:
        in_specs1 += [pl.BlockSpec((L, m_dim), lambda i: (0, 0)),
                      pl.BlockSpec((1, m_dim), lambda i: (0, 0)),
                      pl.BlockSpec((1, m_dim), lambda i: (0, 0))]
        args1 += [m1_pre.astype(F32), gm, bmn]
    m = pl.pallas_call(
        functools.partial(msa_kernel, first=first),
        out_shape=jax.ShapeDtypeStruct((N, L, m_dim), F32),
        grid=(N // TN,),
        in_specs=in_specs1,
        out_specs=pl.BlockSpec((TN, L, m_dim), lambda i: (i, 0, 0)),
        compiler_params=pltpu.CompilerParams(dimension_semantics=("parallel",)),
    )(*args1)

    # ---- kernel 2: pair representation, tiled over the first L ('a') axis ----
    TA = pair_a_tile if pair_a_tile is not None else _pick_a_tile(L)
    assert L % TA == 0 and (TA == L or TA % 8 == 0)
    in_specs2 = [
        pl.BlockSpec((TA, seq_dim), lambda i: (i, 0)),     # seq rows of the a-tile (klinear)
        pl.BlockSpec((L, seq_dim), lambda i: (0, 0)),      # full seq (qlinear)
        pl.BlockSpec((TA, 3), lambda i: (i, 0)),           # CB coords of the a-tile
        pl.BlockSpec((L, 3), lambda i: (0, 0)),            # full CB coords
        pl.BlockSpec((TA * L, 1), lambda i: (i, 0)),       # ss_, flattened pair rows
        pl.BlockSpec((seq_dim, z_dim), lambda i: (0, 0)),  # Wq
        pl.BlockSpec((seq_dim, z_dim), lambda i: (0, 0)),  # Wk
        pl.BlockSpec((65, z_dim), lambda i: (0, 0)),       # Wpos (kept resident in VMEM)
        pl.BlockSpec((1, z_dim), lambda i: (0, 0)),        # pre_z weight
        pl.BlockSpec((2 * D, z_dim), lambda i: (0, 0)),    # stacked [Wsin; Wcos]
        pl.BlockSpec((1, z_dim), lambda i: (0, 0)),        # self-distance weight
        pl.BlockSpec((1, z_dim), lambda i: (0, 0)),        # pre-summed pair bias
        pl.BlockSpec((1, D), lambda i: (0, 0)),            # inverse fourier scales
    ]
    args2 = [seq, seq, cb, cb, ss_flat, wq, wk, wpos, wss, wsc, wself, b_pair, inv_scales]
    if not first:
        zpre_flat = z_pre.astype(F32).reshape(L * L, z_dim)
        in_specs2 += [pl.BlockSpec((TA * L, z_dim), lambda i: (i, 0)),
                      pl.BlockSpec((1, z_dim), lambda i: (0, 0)),
                      pl.BlockSpec((1, z_dim), lambda i: (0, 0))]
        args2 += [zpre_flat, gz, bz]
    z_flat = pl.pallas_call(
        functools.partial(pair_kernel, first=first),
        out_shape=jax.ShapeDtypeStruct((L * L, z_dim), F32),
        grid=(L // TA,),
        in_specs=in_specs2,
        out_specs=pl.BlockSpec((TA * L, z_dim), lambda i: (i, 0)),
        compiler_params=pltpu.CompilerParams(
            dimension_semantics=("parallel",),
            vmem_limit_bytes=48 * 1024 * 1024),
    )(*args2)
    z = z_flat.reshape(L, L, z_dim)

    # ---- Evoformer ----
    # TODO(synk): Evoformer.Evoformer definition not provided; identity passthrough.
    m_evo, z_evo = m, z

    # ---- kernel 3: s = slinear(m[0]) ----
    s = pl.pallas_call(
        linear_kernel,
        out_shape=jax.ShapeDtypeStruct((L, s_dim), F32),
    )(m_evo[0], wsl, bsl)

    return m_evo[0], z_evo, s, m_evo, msa_true, msa_mask


# --------------------------------------------------------------------------- pure-JAX reference
def _reference_forward(params, msa_, ss_, m1_pre, z_pre, pre_x, cycle_index, dis_encoding_dim=64):
    hp = jax.lax.Precision.HIGHEST

    def lin(x, wb):
        w, b = wb
        return jnp.dot(x, w, precision=hp) + b

    def layernorm(x, gb):
        g, b = gb
        mu = jnp.mean(x, axis=-1, keepdims=True)
        var = jnp.mean((x - mu) ** 2, axis=-1, keepdims=True)
        return (x - mu) * jax.lax.rsqrt(var + LN_EPS) * g + b

    N, L, _ = msa_.shape
    first = bool(cycle_index == 0)
    msa_mask = jnp.zeros((N, L), F32)
    msa_true = msa_.astype(F32)
    seq = msa_true[0]
    msa = jnp.concatenate([msa_true * (1 - msa_mask[..., None]), msa_mask[..., None]], -1)

    idx = jnp.arange(L)
    pos1d = ((idx[:, None] & (1 << jnp.arange(14))) > 0).astype(F32)
    rel = jnp.clip(idx[None, :] - idx[:, None], -32, 32) + 32
    pos_oh = jax.nn.one_hot(rel, 65, dtype=F32)

    m = (lin(msa, params["msalinear"]) + lin(seq, params["slinear_pre"])[None]
         + lin(pos1d, params["poslinear2"])[None])
    sq = lin(seq, params["qlinear"])
    sk = lin(seq, params["klinear"])
    z = sq[None, :, :] + sk[:, None, :]
    z = z + lin(pos_oh, params["poslinear"])
    z = z + lin(ss_.astype(F32), params["pre_z"])

    cb = pre_x[:, -1].astype(F32)
    dismap = jnp.sqrt(jnp.sum((cb[:, None, :] - cb[None, :, :]) ** 2, axis=-1))
    scales = 2.0 ** jnp.arange(dis_encoding_dim, dtype=F32)
    d = dismap[..., None] / scales
    dis_z = jnp.concatenate([jnp.sin(d), jnp.cos(d), dismap[..., None]], axis=-1)
    lin_d = lin(dis_z, params["re_linear"])
    if first:
        m1_, z_ = 0.0, lin_d
    else:
        z_ = layernorm(z_pre.astype(F32), params["normz"]) + lin_d
        m1_ = layernorm(m1_pre.astype(F32), params["normm"])
    z = z + z_
    m = jnp.concatenate([(m[0] + m1_)[None], m[1:]], axis=0)
    s = lin(m[0], params["slinear"])
    return m[0], z, s, m, msa_true, msa_mask


# --------------------------------------------------------------------------- main
if __name__ == "__main__":
    key = jax.random.PRNGKey(0)
    N, L = 4, 16
    seq_dim = 21
    msa_dim = seq_dim + 1    # a mask channel is appended before msalinear
    m_dim = 64               # module defaults: m_dim=64, z_dim=64, s_dim=128
    z_dim = 64
    s_dim = 128
    n_atoms = 4

    kp, k1, k2, k3, k4, k5 = jax.random.split(key, 6)
    params = init_params(kp, seq_dim, msa_dim, m_dim, z_dim, s_dim)

    msa_ = jax.random.normal(k1, (N, L, seq_dim), F32)
    ss_ = jax.random.normal(k2, (L, L, 1), F32)
    m1_pre = jax.random.normal(k3, (L, m_dim), F32)
    z_pre = jax.random.normal(k4, (L, L, z_dim), F32)
    pre_x = jax.random.normal(k5, (L, n_atoms, 3), F32)

    for cycle_index in (0, 1):   # exercise both the first-cycle and the recycling variants
        outs = msa2xyz_iteration_forward(params, msa_, ss_, m1_pre, z_pre, pre_x, cycle_index,
                                         msa_row_tile=2, pair_a_tile=8)
        outs = jax.block_until_ready(outs)
        refs = _reference_forward(params, msa_, ss_, m1_pre, z_pre, pre_x, cycle_index)
        # tolerance covers MXU multi-pass f32 rounding; logic errors would be orders larger
        for name, got, want in zip(("m1", "z", "s", "m"), outs[:4], refs[:4]):
            err = float(jnp.max(jnp.abs(got - want)))
            assert err < 2e-2, f"cycle {cycle_index}: {name} max abs err {err}"

    print("KERNEL_OK")
</pallas_src>

<mosaic_0001>
module attributes {stable_mosaic.version = 11 : i64} {
  func.func @msa_kernel(%arg0: i32, %arg1: memref<2x16x22xf32, #tpu.memory_space<vmem>>, %arg2: memref<16x21xf32, #tpu.memory_space<vmem>>, %arg3: memref<16x14xf32, #tpu.memory_space<vmem>>, %arg4: memref<22x64xf32, #tpu.memory_space<vmem>>, %arg5: memref<21x64xf32, #tpu.memory_space<vmem>>, %arg6: memref<14x64xf32, #tpu.memory_space<vmem>>, %arg7: memref<1x64xf32, #tpu.memory_space<vmem>>, %arg8: memref<2x16x64xf32, #tpu.memory_space<vmem>>) attributes {dimension_semantics = [#tpu.dimension_semantics<parallel>], iteration_bounds = array<i64: 2>, scalar_prefetch = 0 : i64, scratch_operands = 0 : i64, tpu.core_type = #tpu.core_type<tc>, window_params = [{transform_indices = @transform_0, window_bounds = array<i64: 2, 16, 22>}, {pipeline_mode = #tpu.pipeline_mode<synchronous>, transform_indices = @transform_1, window_bounds = array<i64: 16, 21>}, {pipeline_mode = #tpu.pipeline_mode<synchronous>, transform_indices = @transform_2, window_bounds = array<i64: 16, 14>}, {pipeline_mode = #tpu.pipeline_mode<synchronous>, transform_indices = @transform_3, window_bounds = array<i64: 22, 64>}, {pipeline_mode = #tpu.pipeline_mode<synchronous>, transform_indices = @transform_4, window_bounds = array<i64: 21, 64>}, {pipeline_mode = #tpu.pipeline_mode<synchronous>, transform_indices = @transform_5, window_bounds = array<i64: 14, 64>}, {pipeline_mode = #tpu.pipeline_mode<synchronous>, transform_indices = @transform_6, window_bounds = array<i64: 1, 64>}, {transform_indices = @transform_7, window_bounds = array<i64: 2, 16, 64>}]} {
    %c0 = arith.constant 0 : index
    %c0_0 = arith.constant 0 : index
    %0 = vector.load %arg2[%c0, %c0_0] : memref<16x21xf32, #tpu.memory_space<vmem>>, vector<16x21xf32>
    %c0_1 = arith.constant 0 : index
    %c0_2 = arith.constant 0 : index
    %1 = vector.load %arg5[%c0_1, %c0_2] : memref<21x64xf32, #tpu.memory_space<vmem>>, vector<21x64xf32>
    %cst = arith.constant dense<0.000000e+00> : vector<16x64xf32>
    %2 = tpu.matmul %0, %1, %cst {dimension_numbers = #tpu.dot_dimension_numbers<[1], [0], [0], [1], [0, 0, 1, 1], [], []>} : vector<16x21xf32>, vector<21x64xf32>, vector<16x64xf32> -> vector<16x64xf32>
    %c0_3 = arith.constant 0 : index
    %c0_4 = arith.constant 0 : index
    %3 = vector.load %arg3[%c0_3, %c0_4] : memref<16x14xf32, #tpu.memory_space<vmem>>, vector<16x14xf32>
    %c0_5 = arith.constant 0 : index
    %c0_6 = arith.constant 0 : index
    %4 = vector.load %arg6[%c0_5, %c0_6] : memref<14x64xf32, #tpu.memory_space<vmem>>, vector<14x64xf32>
    %cst_7 = arith.constant dense<0.000000e+00> : vector<16x64xf32>
    %5 = tpu.matmul %3, %4, %cst_7 {dimension_numbers = #tpu.dot_dimension_numbers<[1], [0], [0], [1], [0, 0, 1, 1], [], []>} : vector<16x14xf32>, vector<14x64xf32>, vector<16x64xf32> -> vector<16x64xf32>
    %6 = arith.addf %2, %5 : vector<16x64xf32>
    %c0_8 = arith.constant 0 : index
    %c0_9 = arith.constant 0 : index
    %7 = vector.load %arg7[%c0_8, %c0_9] : memref<1x64xf32, #tpu.memory_space<vmem>>, vector<1x64xf32>
    %8 = vector.broadcast %7 : vector<1x64xf32> to vector<16x64xf32>
    %9 = arith.addf %6, %8 : vector<16x64xf32>
    %c0_10 = arith.constant 0 : index
    %c0_11 = arith.constant 0 : index
    %c0_12 = arith.constant 0 : index
    %10 = vector.load %arg1[%c0_10, %c0_11, %c0_12] : memref<2x16x22xf32, #tpu.memory_space<vmem>>, vector<2x16x22xf32>
    %11 = vector.shape_cast %10 : vector<2x16x22xf32> to vector<32x22xf32>
    %c0_13 = arith.constant 0 : index
    %c0_14 = arith.constant 0 : index
    %12 = vector.load %arg4[%c0_13, %c0_14] : memref<22x64xf32, #tpu.memory_space<vmem>>, vector<22x64xf32>
    %cst_15 = arith.constant dense<0.000000e+00> : vector<32x64xf32>
    %13 = tpu.matmul %11, %12, %cst_15 {dimension_numbers = #tpu.dot_dimension_numbers<[1], [0], [0], [1], [0, 0, 1, 1], [], []>} : vector<32x22xf32>, vector<22x64xf32>, vector<32x64xf32> -> vector<32x64xf32>
    %14 = vector.shape_cast %13 : vector<32x64xf32> to vector<2x16x64xf32>
    %15 = vector.shape_cast %9 : vector<16x64xf32> to vector<1x16x64xf32>
    %16 = vector.broadcast %15 : vector<1x16x64xf32> to vector<2x16x64xf32>
    %17 = arith.addf %14, %16 : vector<2x16x64xf32>
    %c0_16 = arith.constant 0 : index
    %c0_17 = arith.constant 0 : index
    %c0_18 = arith.constant 0 : index
    %18 = vector.load %arg8[%c0_16, %c0_17, %c0_18] : memref<2x16x64xf32, #tpu.memory_space<vmem>>, vector<2x16x64xf32>
    tpu.vector_store %arg8[%c0_16, %c0_17, %c0_18], %17 {strides = array<i32>} : memref<2x16x64xf32, #tpu.memory_space<vmem>>, vector<2x16x64xf32>,
    return
  }
  func.func @transform_0(%arg0: i32) -> (i32, i32, i32) {
    %c0_i32 = arith.constant 0 : i32
    %c0_i32_0 = arith.constant 0 : i32
    %c0_i32_1 = arith.constant 0 : i32
    return %arg0, %c0_i32, %c0_i32_0 : i32, i32, i32
  }
  func.func @transform_1(%arg0: i32) -> (i32, i32) {
    %c0_i32 = arith.constant 0 : i32
    %c0_i32_0 = arith.constant 0 : i32
    %c0_i32_1 = arith.constant 0 : i32
    return %c0_i32, %c0_i32_0 : i32, i32
  }
  func.func @transform_2(%arg0: i32) -> (i32, i32) {
    %c0_i32 = arith.constant 0 : i32
    %c0_i32_0 = arith.constant 0 : i32
    %c0_i32_1 = arith.constant 0 : i32
    return %c0_i32, %c0_i32_0 : i32, i32
  }
  func.func @transform_3(%arg0: i32) -> (i32, i32) {
    %c0_i32 = arith.constant 0 : i32
    %c0_i32_0 = arith.constant 0 : i32
    %c0_i32_1 = arith.constant 0 : i32
    return %c0_i32, %c0_i32_0 : i32, i32
  }
  func.func @transform_4(%arg0: i32) -> (i32, i32) {
    %c0_i32 = arith.constant 0 : i32
    %c0_i32_0 = arith.constant 0 : i32
    %c0_i32_1 = arith.constant 0 : i32
    return %c0_i32, %c0_i32_0 : i32, i32
  }
  func.func @transform_5(%arg0: i32) -> (i32, i32) {
    %c0_i32 = arith.constant 0 : i32
    %c0_i32_0 = arith.constant 0 : i32
    %c0_i32_1 = arith.constant 0 : i32
    return %c0_i32, %c0_i32_0 : i32, i32
  }
  func.func @transform_6(%arg0: i32) -> (i32, i32) {
    %c0_i32 = arith.constant 0 : i32
    %c0_i32_0 = arith.constant 0 : i32
    %c0_i32_1 = arith.constant 0 : i32
    return %c0_i32, %c0_i32_0 : i32, i32
  }
  func.func @transform_7(%arg0: i32) -> (i32, i32, i32) {
    %c0_i32 = arith.constant 0 : i32
    %c0_i32_0 = arith.constant 0 : i32
    %c0_i32_1 = arith.constant 0 : i32
    return %arg0, %c0_i32, %c0_i32_0 : i32, i32, i32
  }
}

</mosaic_0001>

<llo_original>
// kernel: tpu_custom_call.1
$region0: #{tpu_custom_call.1}
  #allocation0 [shape = 'u32[]', space=smem, size = 0x4, offset = 0x4, fixed_abs, tag = 'smem constant byte address 0x4 - core index']
  #allocation1 [shape = 'u32[144,128]{1,0:T(1,128)}', space=vmem, size = 0x12000, scoped, tag = 'internal scratch']
  %s0 = inlined_call_operand.hbm [shape: f32[4,16,22], index: 0, kind: input, shape index: {}]
  %s1 = inlined_call_operand.hbm [shape: f32[16,21], index: 1, kind: input, shape index: {}]
  %s2 = inlined_call_operand.hbm [shape: f32[16,14], index: 2, kind: input, shape index: {}]
  %s3 = inlined_call_operand.hbm [shape: f32[22,64], index: 3, kind: input, shape index: {}]
  %s4 = inlined_call_operand.hbm [shape: f32[21,64], index: 4, kind: input, shape index: {}]
  %s5 = inlined_call_operand.vmem [shape: f32[14,64], index: 5, kind: input, shape index: {}]
  %s6 = inlined_call_operand.vmem [shape: f32[1,64], index: 6, kind: input, shape index: {}]
  %s7 = inlined_call_operand.hbm [shape: f32[4,16,64], index: 7, kind: output, shape index: {}]
  %s8 = sld [smem:[#allocation0]]
  $region81: #{tpu_custom_call.1} parent=0
    _
  %s10 = ssub.s32 1, %s8
  %s11 = scalar_select 0, %s10, %s8
  $region1: #{tpu_custom_call.1} parent=0
    #allocation2 [shape = 'u8[32768]{0}', space=vmem, size = 0x8000, scoped, tag = 'input window, operand 0']
    #allocation3 [shape = 's32[2]{0}', space=sflag, size = 0x8, scoped, tag = 'scoped memory for tpu_custom_call.1']
    #allocation4 [shape = 's32[2]{0}', space=sflag, size = 0x8, scoped, tag = 'scoped memory for tpu_custom_call.1']
    #allocation5 [shape = 'u8[8192]{0}', space=vmem, size = 0x2000, scoped, tag = 'input window, operand 1, single buffered']
    #allocation6 [shape = 's32[1]{0}', space=sflag, size = 0x4, scoped, tag = 'scoped memory for tpu_custom_call.1']
    #allocation7 [shape = 'u8[8192]{0}', space=vmem, size = 0x2000, scoped, tag = 'input window, operand 2, single buffered']
    #allocation8 [shape = 'u8[12288]{0}', space=vmem, size = 0x3000, scoped, tag = 'input window, operand 3, single buffered']
    #allocation9 [shape = 's32[1]{0}', space=sflag, size = 0x4, scoped, tag = 'scoped memory for tpu_custom_call.1']
    #allocation10 [shape = 'u8[12288]{0}', space=vmem, size = 0x3000, scoped, tag = 'input window, operand 4, single buffered']
    #allocation11 [shape = 'u8[32768]{0}', space=vmem, size = 0x8000, scoped, tag = 'output window, operand 0']
    %12 = vsyncpa [#allocation3], 0
    %s13 = scalar_lea.sflag [#allocation3], 1
    %14 = vsyncpa %s13, 0
    %15 = vsyncpa [#allocation6], 0
    %16 = vsyncpa [#allocation9], 0
    %17 = vsyncpa [#allocation4], 0
    %s18 = scalar_lea.sflag [#allocation4], 1
    %19 = vsyncpa %s18, 0
    loop: start=0, step=1, limit=4
    $region2: #{tpu_custom_call.1} parent=1 // loop_pre_header
      _
    $region3: #{tpu_custom_call.1} parent=1 // loop_header
      %s21 = sphi 0, %s25
      %p22 = scmp.ge.s32.totalorder %s21, 4
      %s31 = sphi 0, %s33
      %s34 = sphi 0, %s31
      %s35 = sphi 0, %s34
      %s51 = sphi 0, %s35
      %s55 = sphi 0, %s55
      %s57 = sphi 0, %s55
      %s58 = sphi 0, %s57
      %s72 = sphi 0, %s58
      %s76 = sphi 0, %s76
      %s78 = sphi 0, %s76
      %s79 = sphi 0, %s78
      %s93 = sphi 0, %s79
      %s97 = sphi 0, %s97
      %s99 = sphi 0, %s97
      %s100 = sphi 0, %s99
      %s114 = sphi 0, %s100
      %s118 = sphi 0, %s118
      %s120 = sphi 0, %s118
      %s121 = sphi 0, %s120
      %s135 = sphi 0, %s121
      %s139 = sphi 0, %s139
      %s141 = sphi 0, %s139
      %s142 = sphi 0, %s141
      %s156 = sphi 0, %s142
      %s160 = sphi 0, %s160
      %s162 = sphi 0, %s160
      %s163 = sphi 0, %s162
      %s177 = sphi 0, %s163
      %s183 = sphi 0, %s185
      %s186 = sphi 0, %s183
      %s187 = sphi 0, %s186
      %s203 = sphi 0, %s187
    $region4: #{tpu_custom_call.1} parent=1 // loop_header_branch
      %24 = sbr.rel (%p22) target = $region8
    $region5: #{tpu_custom_call.1} parent=1 // loop_body
      %s26 = ssub.s32 %s21, 1
      %s27 = ssub.s32 %s21, 2
      %s28 = sadd.s32 %s21, 1
      %s29 = ssub.s32 %s21, %s28
      %p30 = scmp.eq.s32.totalorder %s29, 0
      %s32 = sadd.s32 %s31, 1
      %s33 = scalar_select %p30, %s31, %s32
      %p36 = pneg %p30
      %p37 = scmp.eq.s32.totalorder %s21, 1
      %p38 = por %p36, %p37
      %p39 = scmp.ne.s32.totalorder %s31, %s34
      %p40 = scmp.eq.s32.totalorder %s21, 0
      %p41 = por %p39, %p40
      %p42 = scmp.ne.s32.totalorder %s31, %s34
      %p43 = scmp.eq.s32.totalorder %s26, 1
      %p44 = por %p42, %p43
      %p45 = scmp.ne.s32.totalorder %s34, %s35
      %p46 = scmp.eq.s32.totalorder %s26, 0
      %p47 = por %p45, %p46
      %p48 = scmp.ne.s32.totalorder %s34, %s35
      %p49 = scmp.eq.s32.totalorder %s27, 1
      %p50 = por %p48, %p49
      %p52 = scmp.ne.s32.totalorder %s35, %s51
      %p53 = scmp.eq.s32.totalorder %s27, 0
      %p54 = por %p52, %p53
      %s56 = sadd.s32 %s55, 1
      %p59 = scmp.eq.s32.totalorder %s21, 1
      %p60 = scmp.ne.s32.totalorder %s55, %s57
      %p61 = scmp.eq.s32.totalorder %s21, 0
      %p62 = por %p60, %p61
      %p63 = scmp.ne.s32.totalorder %s55, %s57
      %p64 = scmp.eq.s32.totalorder %s26, 1
      %p65 = por %p63, %p64
      %p66 = scmp.ne.s32.totalorder %s57, %s58
      %p67 = scmp.eq.s32.totalorder %s26, 0
      %p68 = por %p66, %p67
      %p69 = scmp.ne.s32.totalorder %s57, %s58
      %p70 = scmp.eq.s32.totalorder %s27, 1
      %p71 = por %p69, %p70
      %p73 = scmp.ne.s32.totalorder %s58, %s72
      %p74 = scmp.eq.s32.totalorder %s27, 0
      %p75 = por %p73, %p74
      %s77 = sadd.s32 %s76, 1
      %p80 = scmp.eq.s32.totalorder %s21, 1
      %p81 = scmp.ne.s32.totalorder %s76, %s78
      %p82 = scmp.eq.s32.totalorder %s21, 0
      %p83 = por %p81, %p82
      %p84 = scmp.ne.s32.totalorder %s76, %s78
      %p85 = scmp.eq.s32.totalorder %s26, 1
      %p86 = por %p84, %p85
      %p87 = scmp.ne.s32.totalorder %s78, %s79
      %p88 = scmp.eq.s32.totalorder %s26, 0
      %p89 = por %p87, %p88
      %p90 = scmp.ne.s32.totalorder %s78, %s79
      %p91 = scmp.eq.s32.totalorder %s27, 1
      %p92 = por %p90, %p91
      %p94 = scmp.ne.s32.totalorder %s79, %s93
      %p95 = scmp.eq.s32.totalorder %s27, 0
      %p96 = por %p94, %p95
      %s98 = sadd.s32 %s97, 1
      %p101 = scmp.eq.s32.totalorder %s21, 1
      %p102 = scmp.ne.s32.totalorder %s97, %s99
      %p103 = scmp.eq.s32.totalorder %s21, 0
      %p104 = por %p102, %p103
      %p105 = scmp.ne.s32.totalorder %s97, %s99
      %p106 = scmp.eq.s32.totalorder %s26, 1
      %p107 = por %p105, %p106
      %p108 = scmp.ne.s32.totalorder %s99, %s100
      %p109 = scmp.eq.s32.totalorder %s26, 0
      %p110 = por %p108, %p109
      %p111 = scmp.ne.s32.totalorder %s99, %s100
      %p112 = scmp.eq.s32.totalorder %s27, 1
      %p113 = por %p111, %p112
      %p115 = scmp.ne.s32.totalorder %s100, %s114
      %p116 = scmp.eq.s32.totalorder %s27, 0
      %p117 = por %p115, %p116
      %s119 = sadd.s32 %s118, 1
      %p122 = scmp.eq.s32.totalorder %s21, 1
      %p123 = scmp.ne.s32.totalorder %s118, %s120
      %p124 = scmp.eq.s32.totalorder %s21, 0
      %p125 = por %p123, %p124
      %p126 = scmp.ne.s32.totalorder %s118, %s120
      %p127 = scmp.eq.s32.totalorder %s26, 1
      %p128 = por %p126, %p127
      %p129 = scmp.ne.s32.totalorder %s120, %s121
      %p130 = scmp.eq.s32.totalorder %s26, 0
      %p131 = por %p129, %p130
      %p132 = scmp.ne.s32.totalorder %s120, %s121
      %p133 = scmp.eq.s32.totalorder %s27, 1
      %p134 = por %p132, %p133
      %p136 = scmp.ne.s32.totalorder %s121, %s135
      %p137 = scmp.eq.s32.totalorder %s27, 0
      %p138 = por %p136, %p137
      %s140 = sadd.s32 %s139, 1
      %p143 = scmp.eq.s32.totalorder %s21, 1
      %p144 = scmp.ne.s32.totalorder %s139, %s141
      %p145 = scmp.eq.s32.totalorder %s21, 0
      %p146 = por %p144, %p145
      %p147 = scmp.ne.s32.totalorder %s139, %s141
      %p148 = scmp.eq.s32.totalorder %s26, 1
      %p149 = por %p147, %p148
      %p150 = scmp.ne.s32.totalorder %s141, %s142
      %p151 = scmp.eq.s32.totalorder %s26, 0
      %p152 = por %p150, %p151
      %p153 = scmp.ne.s32.totalorder %s141, %s142
      %p154 = scmp.eq.s32.totalorder %s27, 1
      %p155 = por %p153, %p154
      %p157 = scmp.ne.s32.totalorder %s142, %s156
      %p158 = scmp.eq.s32.totalorder %s27, 0
      %p159 = por %p157, %p158
      %s161 = sadd.s32 %s160, 1
      %p164 = scmp.eq.s32.totalorder %s21, 1
      %p165 = scmp.ne.s32.totalorder %s160, %s162
      %p166 = scmp.eq.s32.totalorder %s21, 0
      %p167 = por %p165, %p166
      %p168 = scmp.ne.s32.totalorder %s160, %s162
      %p169 = scmp.eq.s32.totalorder %s26, 1
      %p170 = por %p168, %p169
      %p171 = scmp.ne.s32.totalorder %s162, %s163
      %p172 = scmp.eq.s32.totalorder %s26, 0
      %p173 = por %p171, %p172
      %p174 = scmp.ne.s32.totalorder %s162, %s163
      %p175 = scmp.eq.s32.totalorder %s27, 1
      %p176 = por %p174, %p175
      %p178 = scmp.ne.s32.totalorder %s163, %s177
      %p179 = scmp.eq.s32.totalorder %s27, 0
      %p180 = por %p178, %p179
      %s181 = ssub.s32 %s21, %s28
      %p182 = scmp.eq.s32.totalorder %s181, 0
      %s184 = sadd.s32 %s183, 1
      %s185 = scalar_select %p182, %s183, %s184
      %p188 = pneg %p182
      %p189 = scmp.eq.s32.totalorder %s21, 1
      %p190 = por %p188, %p189
      %p191 = scmp.ne.s32.totalorder %s183, %s186
      %p192 = scmp.eq.s32.totalorder %s21, 0
      %p193 = por %p191, %p192
      %p194 = scmp.ne.s32.totalorder %s183, %s186
      %p195 = scmp.eq.s32.totalorder %s26, 1
      %p196 = por %p194, %p195
      %p197 = scmp.ne.s32.totalorder %s186, %s187
      %p198 = scmp.eq.s32.totalorder %s26, 0
      %p199 = por %p197, %p198
      %p200 = scmp.ne.s32.totalorder %s186, %s187
      %p201 = scmp.eq.s32.totalorder %s27, 1
      %p202 = por %p200, %p201
      %p204 = scmp.ne.s32.totalorder %s187, %s203
      %p205 = scmp.eq.s32.totalorder %s27, 0
      %p206 = por %p204, %p205
      %p207 = scmp.le.s32.totalorder 1, %s21
      %p208 = scmp.lt.s32.totalorder %s21, 3
      %p209 = pnand %p207, %p208
      %p210 = pneg %p209
      // Predicated region
      $region9: #{tpu_custom_call.1} parent=5 // pred_check
        _
      $region10: #{tpu_custom_call.1} parent=5 // pred_check_branch
        %212 = sbr.rel (%p209) target = $region12
      $region11: #{tpu_custom_call.1} parent=5 // pred_region
        %s213 = ssub.s32 %s21, 1
        // Predicated region
        $region13: #{tpu_custom_call.1} parent=11 // pred_check
          %p214 = pneg %p68
        $region14: #{tpu_custom_call.1} parent=11 // pred_check_branch
          %216 = sbr.rel (%p214) target = $region16
        $region15: #{tpu_custom_call.1} parent=11 // pred_region
          %s218 = ssub.s32 256, 256
          %219 = vsyncadd [#allocation6], %s218
          %s220 = sshll.u32 [#allocation5], 4
          %s221 = int_to_ptr.vmem [resolvable:$true] %s220
          %226 = dma.hbm_to_vmem [thread:$0]  %s1, 256, %s221, [#allocation6], 128, 128, 8
        $region16: #{tpu_custom_call.1} parent=11 // pred_fallthru
          _
        // Predicated region
        $region17: #{tpu_custom_call.1} parent=11 // pred_check
          %p227 = pneg %p89
        $region18: #{tpu_custom_call.1} parent=11 // pred_check_branch
          %229 = sbr.rel (%p227) target = $region20
        $region19: #{tpu_custom_call.1} parent=11 // pred_region
          %s231 = ssub.s32 256, 256
          %232 = vsyncadd [#allocation6], %s231
          %s233 = sshll.u32 [#allocation7], 4
          %s234 = int_to_ptr.vmem [resolvable:$true] %s233
          %239 = dma.hbm_to_vmem [thread:$0]  %s2, 256, %s234, [#allocation6], 128, 128, 8
        $region20: #{tpu_custom_call.1} parent=11 // pred_fallthru
          _
        // Predicated region
        $region21: #{tpu_custom_call.1} parent=11 // pred_check
          %p240 = pneg %p110
        $region22: #{tpu_custom_call.1} parent=11 // pred_check_branch
          %242 = sbr.rel (%p240) target = $region24
        $region23: #{tpu_custom_call.1} parent=11 // pred_region
          %s244 = ssub.s32 384, 384
          %245 = vsyncadd [#allocation9], %s244
          %s246 = sshll.u32 [#allocation8], 4
          %s247 = int_to_ptr.vmem [resolvable:$true] %s246
          %252 = dma.hbm_to_vmem [thread:$0]  %s3, 384, %s247, [#allocation9], 128, 128, 8
        $region24: #{tpu_custom_call.1} parent=11 // pred_fallthru
          _
        // Predicated region
        $region25: #{tpu_custom_call.1} parent=11 // pred_check
          %p253 = pneg %p131
        $region26: #{tpu_custom_call.1} parent=11 // pred_check_branch
          %255 = sbr.rel (%p253) target = $region28
        $region27: #{tpu_custom_call.1} parent=11 // pred_region
          %s257 = ssub.s32 384, 384
          %258 = vsyncadd [#allocation9], %s257
          %s259 = sshll.u32 [#allocation10], 4
          %s260 = int_to_ptr.vmem [resolvable:$true] %s259
          %265 = dma.hbm_to_vmem [thread:$0]  %s4, 384, %s260, [#allocation9], 128, 128, 8
        $region28: #{tpu_custom_call.1} parent=11 // pred_fallthru
          _
        // Predicated region
        $region29: #{tpu_custom_call.1} parent=11 // pred_check
          %p266 = pneg %p152
        $region30: #{tpu_custom_call.1} parent=11 // pred_check_branch
          %268 = sbr.rel (%p266) target = $region32
        $region31: #{tpu_custom_call.1} parent=11 // pred_region
          _
        $region32: #{tpu_custom_call.1} parent=11 // pred_fallthru
          _
        // Predicated region
        $region33: #{tpu_custom_call.1} parent=11 // pred_check
          %p269 = pneg %p173
        $region34: #{tpu_custom_call.1} parent=11 // pred_check_branch
          %271 = sbr.rel (%p269) target = $region36
        $region35: #{tpu_custom_call.1} parent=11 // pred_region
          _
        $region36: #{tpu_custom_call.1} parent=11 // pred_fallthru
          _
      $region12: #{tpu_custom_call.1} parent=5 // pred_fallthru
        _
      %p272 = scmp.lt.s32.totalorder %s21, 2
      // Predicated region
      $region37: #{tpu_custom_call.1} parent=5 // pred_check
        %p273 = pneg %p272
      $region38: #{tpu_custom_call.1} parent=5 // pred_check_branch
        %275 = sbr.rel (%p273) target = $region40
      $region39: #{tpu_custom_call.1} parent=5 // pred_region
        // Predicated region
        $region41: #{tpu_custom_call.1} parent=39 // pred_check
          %p276 = pneg %p41
        $region42: #{tpu_custom_call.1} parent=39 // pred_check_branch
          %278 = sbr.rel (%p276) target = $region44
        $region43: #{tpu_custom_call.1} parent=39 // pred_region
          %s279 = sand.u32 %s31, 1
          %s280 = scalar_lea.sflag [#allocation3], %s279
          %s281 = sand.u32 %s31, 1
          %s282 = smul.addr %s281, 32
          %s283 = scalar_lea.vmem [#allocation2], %s282
          %s284 = smul.u32 2, %s21
          %s286 = ssub.s32 512, 512
          %287 = vsyncadd %s280, %s286
          %s288 = smul.addr %s284, 2
          %s289 = smul.addr %s288, 128
          %s290 = scalar_lea.hbm %s0, %s289
          %s291 = sshll.u32 %s283, 4
          %s292 = int_to_ptr.vmem [resolvable:$true] %s291
          %297 = dma.hbm_to_vmem [thread:$0]  %s290, 512, %s292, %s280, 128, 128, 8
        $region44: #{tpu_custom_call.1} parent=39 // pred_fallthru
          _
      $region40: #{tpu_custom_call.1} parent=5 // pred_fallthru
        _
      %p298 = scmp.le.s32.totalorder 1, %s21
      %p299 = scmp.lt.s32.totalorder %s21, 3
      %p300 = pnand %p298, %p299
      %p301 = pneg %p300
      // Predicated region
      $region45: #{tpu_custom_call.1} parent=5 // pred_check
        _
      $region46: #{tpu_custom_call.1} parent=5 // pred_check_branch
        %303 = sbr.rel (%p300) target = $region48
      $region47: #{tpu_custom_call.1} parent=5 // pred_region
        %s304 = ssub.s32 %s21, 1
        %s305 = sand.u32 %s34, 1
        %s306 = scalar_lea.sflag [#allocation3], %s305
        %s307 = sand.u32 %s34, 1
        %s308 = smul.addr %s307, 32
        %s309 = scalar_lea.vmem [#allocation2], %s308
        // Predicated region
        $region49: #{tpu_custom_call.1} parent=47 // pred_check
          %p310 = pneg %p47
        $region50: #{tpu_custom_call.1} parent=47 // pred_check_branch
          %312 = sbr.rel (%p310) target = $region52
        $region51: #{tpu_custom_call.1} parent=47 // pred_region
          %313 = dma.done %s306, 512
        $region52: #{tpu_custom_call.1} parent=47 // pred_fallthru
          _
        // Predicated region
        $region53: #{tpu_custom_call.1} parent=47 // pred_check
          %p314 = pneg %p68
        $region54: #{tpu_custom_call.1} parent=47 // pred_check_branch
          %316 = sbr.rel (%p314) target = $region56
        $region55: #{tpu_custom_call.1} parent=47 // pred_region
          %317 = dma.done [#allocation6], 256
        $region56: #{tpu_custom_call.1} parent=47 // pred_fallthru
          _
        // Predicated region
        $region57: #{tpu_custom_call.1} parent=47 // pred_check
          %p318 = pneg %p89
        $region58: #{tpu_custom_call.1} parent=47 // pred_check_branch
          %320 = sbr.rel (%p318) target = $region60
        $region59: #{tpu_custom_call.1} parent=47 // pred_region
          %321 = dma.done [#allocation6], 256
        $region60: #{tpu_custom_call.1} parent=47 // pred_fallthru
          _
        // Predicated region
        $region61: #{tpu_custom_call.1} parent=47 // pred_check
          %p322 = pneg %p110
        $region62: #{tpu_custom_call.1} parent=47 // pred_check_branch
          %324 = sbr.rel (%p322) target = $region64
        $region63: #{tpu_custom_call.1} parent=47 // pred_region
          %325 = dma.done [#allocation9], 384
        $region64: #{tpu_custom_call.1} parent=47 // pred_fallthru
          _
        // Predicated region
        $region65: #{tpu_custom_call.1} parent=47 // pred_check
          %p326 = pneg %p131
        $region66: #{tpu_custom_call.1} parent=47 // pred_check_branch
          %328 = sbr.rel (%p326) target = $region68
        $region67: #{tpu_custom_call.1} parent=47 // pred_region
          %329 = dma.done [#allocation9], 384
        $region68: #{tpu_custom_call.1} parent=47 // pred_fallthru
          _
        %s330 = sand.u32 %s34, 1
        %s331 = scalar_lea.sflag [#allocation3], %s330
        %s332 = sand.u32 %s34, 1
        %s333 = smul.addr %s332, 32
        %s334 = scalar_lea.vmem [#allocation2], %s333
        %p335 = pneg %p47
        %p336 = pneg %p44
        %p337 = pneg %p68
        %p338 = pneg %p65
        %p339 = pneg %p89
        %p340 = pneg %p86
        %p341 = pneg %p110
        %p342 = pneg %p107
        %p343 = pneg %p131
        %p344 = pneg %p128
        %p345 = pneg %p152
        %p346 = pneg %p149
        %p347 = pneg %p173
        %p348 = pneg %p170
        %p349 = pneg %p199
        %p350 = pneg %p196
        %s351 = sand.u32 %s186, 1
        %s352 = scalar_lea.sflag [#allocation4], %s351
        %s353 = sand.u32 %s186, 1
        %s354 = smul.addr %s353, 32
        %s355 = scalar_lea.vmem [#allocation11], %s354
        %s356 = smul.u32 2, %s26
        %s357 = smul.u32 2, %s26
        %v358 = vld [vmem:[#allocation5] sm:$0xff]
        %v359 = vld [vmem:[#allocation5 + $0x8] sm:$0xff]
        %v360 = vld [vmem:[#allocation10] sm:$0xff]
        %v361 = vld [vmem:[#allocation10 + $0x8] sm:$0xff]
        %v362 = vld [vmem:[#allocation10 + $0x10] sm:$0x1f]
        %v363 = vld [vmem:[#allocation7] sm:$0xff]
        %v364 = vld [vmem:[#allocation7 + $0x8] sm:$0xff]
        %v365 = vld [vmem:[%s5] sm:$0xff]
        %v366 = vld [vmem:[%s5 + $0x8] sm:$0x3f]
        %vm367 = vcmask 113664
        %v369 = vsel %vm367, %v363, 0
        %v372 = vsel %vm367, %v364, 0
        %vm374 = vcmask 1045504
        %v376 = vsel %vm374, %v366, 0
        %378 = vmatprep.subr.mxu0 0.0
        %379 = vmatpush1.msra.mxu0 %v365
        %380 = vmatprep.subr.mxu0 0.0
        %381 = vmatpush1.msra.mxu0 %v376
        %382 = vmatprep.subr.mxu0 0.0
        %383 = vmatpush1.msra.mxu0 0.0
        %384 = vmatprep.subr.mxu0 0.0
        %385 = vmatpush1.msra.mxu0 0.0
        %386 = vmatprep.subr.mxu0 0.0
        %387 = vmatpush1.msra.mxu0 0.0
        %388 = vmatprep.subr.mxu0 0.0
        %389 = vmatpush1.msra.mxu0 0.0
        %390 = vmatprep.subr.mxu0 0.0
        %391 = vmatpush1.msra.mxu0 0.0
        %392 = vmatprep.subr.mxu0 0.0
        %393 = vmatpush1.msra.mxu0 0.0
        %394 = vmatprep.subr.mxu0 0.0
        %395 = vmatpush1.msra.mxu0 0.0
        %396 = vmatprep.subr.mxu0 0.0
        %397 = vmatpush1.msra.mxu0 0.0
        %398 = vmatprep.subr.mxu0 0.0
        %399 = vmatpush1.msra.mxu0 0.0
        %400 = vmatprep.subr.mxu0 0.0
        %401 = vmatpush1.msra.mxu0 0.0
        %402 = vmatprep.subr.mxu0 0.0
        %403 = vmatpush1.msra.mxu0 0.0
        %404 = vmatprep.subr.mxu0 0.0
        %405 = vmatpush1.msra.mxu0 0.0
        %406 = vmatprep.subr.mxu0 0.0
        %407 = vmatpush1.msra.mxu0 0.0
        %408 = vmatprep.subr.mxu0 0.0
        %409 = vmatpush1.msra.mxu0 0.0
        %410 = vmatprep.subr.mxu0 0.0
        %411 = vmatpush1.msra.mxu0 0.0
        %412 = vmatprep.subr.mxu0 0.0
        %413 = vmatpush1.msra.mxu0 0.0
        %414 = vmatprep.subr.mxu0 0.0
        %415 = vmatpush1.msra.mxu0 0.0
        %416 = vmatprep.subr.mxu0 0.0
        %417 = vmatpush1.msra.mxu0 0.0
        %418 = vmatprep.subr.mxu0 0.0
        %419 = vmatpush1.msra.mxu0 0.0
        %420 = vmatprep.subr.mxu0 0.0
        %421 = vmatpush1.msra.mxu0 0.0
        %422 = vmatprep.subr.mxu0 0.0
        %423 = vmatpush1.msra.mxu0 0.0
        %424 = vmatprep.subr.mxu0 0.0
        %425 = vmatpush1.msra.mxu0 0.0
        %426 = vmatprep.subr.mxu0 0.0
        %427 = vmatpush1.msra.mxu0 0.0
        %428 = vmatprep.subr.mxu0 0.0
        %429 = vmatpush1.msra.mxu0 0.0
        %430 = vmatprep.subr.mxu0 0.0
        %431 = vmatpush1.msra.mxu0 0.0
        %432 = vmatprep.subr.mxu0 0.0
        %433 = vmatpush1.msra.mxu0 0.0
        %434 = vmatprep.subr.mxu0 0.0
        %435 = vmatpush1.msra.mxu0 0.0
        %436 = vmatprep.subr.mxu0 0.0
        %437 = vmatpush1.msra.mxu0 0.0
        %438 = vmatprep.subr.mxu0 0.0
        %439 = vmatpush1.msra.mxu0 0.0
        %440 = vmatprep.subr.mxu0 0.0
        %441 = vmatpush1.msra.mxu0 0.0
        %442 = vmatprep.mubr.f32.mxu0 0.0
        %443 = vmatmul.mubr.f32.gmra.mrb[0].mxu0 %v369
        %v444 = vpop.f32.mrb[0].mxu0
        %v445 = vadd.f32 0.0, %v444
        %v446 = vpop.f32.mrb[0].mxu0
        %447 = vmatprep.mubr.f32.mxu0 0.0
        %448 = vmatmul.mubr.f32.gmra.mrb[0].mxu0 %v372
        %v449 = vpop.f32.mrb[0].mxu0
        %v450 = vadd.f32 0.0, %v449
        %v451 = vpop.f32.mrb[0].mxu0
        %452 = vdwg.mxu0
        %vm453 = vcmask 171008
        %v455 = vsel %vm453, %v358, 0
        %v458 = vsel %vm453, %v359, 0
        %vm460 = vcmask 1044480
        %v462 = vsel %vm460, %v362, 0
        %464 = vmatprep.subr.mxu0 0.0
        %465 = vmatpush1.msra.mxu0 %v360
        %466 = vmatprep.subr.mxu0 0.0
        %467 = vmatpush1.msra.mxu0 %v361
        %468 = vmatprep.subr.mxu0 0.0
        %469 = vmatpush1.msra.mxu0 %v462
        %470 = vmatprep.subr.mxu0 0.0
        %471 = vmatpush1.msra.mxu0 0.0
        %472 = vmatprep.subr.mxu0 0.0
        %473 = vmatpush1.msra.mxu0 0.0
        %474 = vmatprep.subr.mxu0 0.0
        %475 = vmatpush1.msra.mxu0 0.0
        %476 = vmatprep.subr.mxu0 0.0
        %477 = vmatpush1.msra.mxu0 0.0
        %478 = vmatprep.subr.mxu0 0.0
        %479 = vmatpush1.msra.mxu0 0.0
        %480 = vmatprep.subr.mxu0 0.0
        %481 = vmatpush1.msra.mxu0 0.0
        %482 = vmatprep.subr.mxu0 0.0
        %483 = vmatpush1.msra.mxu0 0.0
        %484 = vmatprep.subr.mxu0 0.0
        %485 = vmatpush1.msra.mxu0 0.0
        %486 = vmatprep.subr.mxu0 0.0
        %487 = vmatpush1.msra.mxu0 0.0
        %488 = vmatprep.subr.mxu0 0.0
        %489 = vmatpush1.msra.mxu0 0.0
        %490 = vmatprep.subr.mxu0 0.0
        %491 = vmatpush1.msra.mxu0 0.0
        %492 = vmatprep.subr.mxu0 0.0
        %493 = vmatpush1.msra.mxu0 0.0
        %494 = vmatprep.subr.mxu0 0.0
        %495 = vmatpush1.msra.mxu0 0.0
        %496 = vmatprep.subr.mxu0 0.0
        %497 = vmatpush1.msra.mxu0 0.0
        %498 = vmatprep.subr.mxu0 0.0
        %499 = vmatpush1.msra.mxu0 0.0
        %500 = vmatprep.subr.mxu0 0.0
        %501 = vmatpush1.msra.mxu0 0.0
        %502 = vmatprep.subr.mxu0 0.0
        %503 = vmatpush1.msra.mxu0 0.0
        %504 = vmatprep.subr.mxu0 0.0
        %505 = vmatpush1.msra.mxu0 0.0
        %506 = vmatprep.subr.mxu0 0.0
        %507 = vmatpush1.msra.mxu0 0.0
        %508 = vmatprep.subr.mxu0 0.0
        %509 = vmatpush1.msra.mxu0 0.0
        %510 = vmatprep.subr.mxu0 0.0
        %511 = vmatpush1.msra.mxu0 0.0
        %512 = vmatprep.subr.mxu0 0.0
        %513 = vmatpush1.msra.mxu0 0.0
        %514 = vmatprep.subr.mxu0 0.0
        %515 = vmatpush1.msra.mxu0 0.0
        %516 = vmatprep.subr.mxu0 0.0
        %517 = vmatpush1.msra.mxu0 0.0
        %518 = vmatprep.subr.mxu0 0.0
        %519 = vmatpush1.msra.mxu0 0.0
        %520 = vmatprep.subr.mxu0 0.0
        %521 = vmatpush1.msra.mxu0 0.0
        %522 = vmatprep.subr.mxu0 0.0
        %523 = vmatpush1.msra.mxu0 0.0
        %524 = vmatprep.subr.mxu0 0.0
        %525 = vmatpush1.msra.mxu0 0.0
        %526 = vmatprep.subr.mxu0 0.0
        %527 = vmatpush1.msra.mxu0 0.0
        %528 = vmatprep.mubr.f32.mxu0 0.0
        %529 = vmatmul.mubr.f32.gmra.mrb[0].mxu0 %v455
        %v530 = vpop.f32.mrb[0].mxu0
        %v531 = vadd.f32 %v445, %v530
        %v532 = vpop.f32.mrb[0].mxu0
        %533 = vmatprep.mubr.f32.mxu0 0.0
        %534 = vmatmul.mubr.f32.gmra.mrb[0].mxu0 %v458
        %v535 = vpop.f32.mrb[0].mxu0
        %v536 = vadd.f32 %v450, %v535
        %v537 = vpop.f32.mrb[0].mxu0
        %538 = vdwg.mxu0
        %v539 = vld [vmem:[%s6] sm:$0x1]
        %v541 = vlaneseq
        %v542 = vshrl.u32 %v541, 7
        %v543 = vsub.s32 0, %v542
        %v544 = vrot.slane %v539, %v543
        %v546 = vadd.f32 %v531, %v544
        %v547 = vadd.f32 %v536, %v544
        %v548 = vld [vmem:[%s309] sm:$0xff]
        %v549 = vld [vmem:[%s309 + $0x8] sm:$0xff]
        %v550 = vld [vmem:[%s309 + $0x10] sm:$0xff]
        %v551 = vld [vmem:[%s309 + $0x18] sm:$0xff]
        %v552 = vld [vmem:[#allocation8] sm:$0xff]
        %v553 = vld [vmem:[#allocation8 + $0x8] sm:$0xff]
        %v554 = vld [vmem:[#allocation8 + $0x10] sm:$0x3f]
        %vm555 = vcmask 179200
        %v557 = vsel %vm555, %v548, 0
        %v560 = vsel %vm555, %v549, 0
        %v563 = vsel %vm555, %v550, 0
        %v566 = vsel %vm555, %v551, 0
        %v569 = vsel %vm374, %v554, 0
        %571 = vmatprep.subr.mxu0 0.0
        %572 = vmatpush1.msra.mxu0 %v552
        %573 = vmatprep.subr.mxu0 0.0
        %574 = vmatpush1.msra.mxu0 %v553
        %575 = vmatprep.subr.mxu0 0.0
        %576 = vmatpush1.msra.mxu0 %v569
        %577 = vmatprep.subr.mxu0 0.0
        %578 = vmatpush1.msra.mxu0 0.0
        %579 = vmatprep.subr.mxu0 0.0
        %580 = vmatpush1.msra.mxu0 0.0
        %581 = vmatprep.subr.mxu0 0.0
        %582 = vmatpush1.msra.mxu0 0.0
        %583 = vmatprep.subr.mxu0 0.0
        %584 = vmatpush1.msra.mxu0 0.0
        %585 = vmatprep.subr.mxu0 0.0
        %586 = vmatpush1.msra.mxu0 0.0
        %587 = vmatprep.subr.mxu0 0.0
        %588 = vmatpush1.msra.mxu0 0.0
        %589 = vmatprep.subr.mxu0 0.0
        %590 = vmatpush1.msra.mxu0 0.0
        %591 = vmatprep.subr.mxu0 0.0
        %592 = vmatpush1.msra.mxu0 0.0
        %593 = vmatprep.subr.mxu0 0.0
        %594 = vmatpush1.msra.mxu0 0.0
        %595 = vmatprep.subr.mxu0 0.0
        %596 = vmatpush1.msra.mxu0 0.0
        %597 = vmatprep.subr.mxu0 0.0
        %598 = vmatpush1.msra.mxu0 0.0
        %599 = vmatprep.subr.mxu0 0.0
        %600 = vmatpush1.msra.mxu0 0.0
        %601 = vmatprep.subr.mxu0 0.0
        %602 = vmatpush1.msra.mxu0 0.0
        %603 = vmatprep.subr.mxu0 0.0
        %604 = vmatpush1.msra.mxu0 0.0
        %605 = vmatprep.subr.mxu0 0.0
        %606 = vmatpush1.msra.mxu0 0.0
        %607 = vmatprep.subr.mxu0 0.0
        %608 = vmatpush1.msra.mxu0 0.0
        %609 = vmatprep.subr.mxu0 0.0
        %610 = vmatpush1.msra.mxu0 0.0
        %611 = vmatprep.subr.mxu0 0.0
        %612 = vmatpush1.msra.mxu0 0.0
        %613 = vmatprep.subr.mxu0 0.0
        %614 = vmatpush1.msra.mxu0 0.0
        %615 = vmatprep.subr.mxu0 0.0
        %616 = vmatpush1.msra.mxu0 0.0
        %617 = vmatprep.subr.mxu0 0.0
        %618 = vmatpush1.msra.mxu0 0.0
        %619 = vmatprep.subr.mxu0 0.0
        %620 = vmatpush1.msra.mxu0 0.0
        %621 = vmatprep.subr.mxu0 0.0
        %622 = vmatpush1.msra.mxu0 0.0
        %623 = vmatprep.subr.mxu0 0.0
        %624 = vmatpush1.msra.mxu0 0.0
        %625 = vmatprep.subr.mxu0 0.0
        %626 = vmatpush1.msra.mxu0 0.0
        %627 = vmatprep.subr.mxu0 0.0
        %628 = vmatpush1.msra.mxu0 0.0
        %629 = vmatprep.subr.mxu0 0.0
        %630 = vmatpush1.msra.mxu0 0.0
        %631 = vmatprep.subr.mxu0 0.0
        %632 = vmatpush1.msra.mxu0 0.0
        %633 = vmatprep.subr.mxu0 0.0
        %634 = vmatpush1.msra.mxu0 0.0
        %635 = vmatprep.mubr.f32.mxu0 0.0
        %636 = vmatmul.mubr.f32.gmra.mrb[0].mxu0 %v557
        %v637 = vpop.f32.mrb[0].mxu0
        %v638 = vadd.f32 0.0, %v637
        %v639 = vpop.f32.mrb[0].mxu0
        %640 = vmatprep.mubr.f32.mxu0 0.0
        %641 = vmatmul.mubr.f32.gmra.mrb[0].mxu0 %v560
        %v642 = vpop.f32.mrb[0].mxu0
        %v643 = vadd.f32 0.0, %v642
        %v644 = vpop.f32.mrb[0].mxu0
        %645 = vmatprep.mubr.f32.mxu0 0.0
        %646 = vmatmul.mubr.f32.gmra.mrb[0].mxu0 %v563
        %v647 = vpop.f32.mrb[0].mxu0
        %v648 = vadd.f32 0.0, %v647
        %v649 = vpop.f32.mrb[0].mxu0
        %650 = vmatprep.mubr.f32.mxu0 0.0
        %651 = vmatmul.mubr.f32.gmra.mrb[0].mxu0 %v566
        %v652 = vpop.f32.mrb[0].mxu0
        %v653 = vadd.f32 0.0, %v652
        %v654 = vpop.f32.mrb[0].mxu0
        %655 = vdwg.mxu0
        %v656 = vadd.f32 %v638, %v546
        %v657 = vadd.f32 %v643, %v547
        %v658 = vadd.f32 %v648, %v546
        %v659 = vadd.f32 %v653, %v547
        %vm660 = vcmask 523264
        %661 = vst.msk [vmem:[%s355] sm:$0xff] %vm660, %v656
        %662 = vst.msk [vmem:[%s355 + $0x8] sm:$0xff] %vm660, %v657
        %663 = vst.msk [vmem:[%s355 + $0x10] sm:$0xff] %vm660, %v658
        %664 = vst.msk [vmem:[%s355 + $0x18] sm:$0xff] %vm660, %v659
        %s665 = sand.u32 %s186, 1
        %s666 = scalar_lea.sflag [#allocation4], %s665
        %s667 = sand.u32 %s186, 1
        %s668 = smul.addr %s667, 32
        %s669 = scalar_lea.vmem [#allocation11], %s668
        // Predicated region
        $region69: #{tpu_custom_call.1} parent=47 // pred_check
          %p670 = pneg %p196
        $region70: #{tpu_custom_call.1} parent=47 // pred_check_branch
          %672 = sbr.rel (%p670) target = $region72
        $region71: #{tpu_custom_call.1} parent=47 // pred_region
          %s673 = smul.u32 2, %s26
          %s675 = ssub.s32 512, 512
          %676 = vsyncadd %s666, %s675
          %s677 = smul.addr %s673, 2
          %s678 = smul.addr %s677, 128
          %s679 = scalar_lea.hbm %s7, %s678
          %s680 = sshll.u32 %s669, 4
          %s681 = int_to_ptr.vmem [resolvable:$true] %s680
          %686 = dma.vmem_to_hbm [thread:$0]  %s681, 512, %s679, %s666, 128, 128, 8
        $region72: #{tpu_custom_call.1} parent=47 // pred_fallthru
          _
      $region48: #{tpu_custom_call.1} parent=5 // pred_fallthru
        _
      %p687 = scmp.le.s32.totalorder 2, %s21
      // Predicated region
      $region73: #{tpu_custom_call.1} parent=5 // pred_check
        %p688 = pneg %p687
      $region74: #{tpu_custom_call.1} parent=5 // pred_check_branch
        %690 = sbr.rel (%p688) target = $region76
      $region75: #{tpu_custom_call.1} parent=5 // pred_region
        %s691 = ssub.s32 %s21, 2
        // Predicated region
        $region77: #{tpu_custom_call.1} parent=75 // pred_check
          %p692 = pneg %p202
        $region78: #{tpu_custom_call.1} parent=75 // pred_check_branch
          %694 = sbr.rel (%p692) target = $region80
        $region79: #{tpu_custom_call.1} parent=75 // pred_region
          %s695 = sand.u32 %s187, 1
          %s696 = scalar_lea.sflag [#allocation4], %s695
          %s697 = sand.u32 %s187, 1
          %s698 = smul.addr %s697, 32
          %s699 = scalar_lea.vmem [#allocation11], %s698
          %700 = dma.done %s696, 512
        $region80: #{tpu_custom_call.1} parent=75 // pred_fallthru
          _
      $region76: #{tpu_custom_call.1} parent=5 // pred_fallthru
        _
    $region6: #{tpu_custom_call.1} parent=1 // loop_footer
      %s25 = sadd.s32 1, %s21
    $region7: #{tpu_custom_call.1} parent=1 // loop_footer_branch
      %20 = sbr.rel target = $region3
    $region8: #{tpu_custom_call.1} parent=1 // loop_exit
      _
    %701 = vsyncpa [#allocation3], 1
    %s702 = scalar_lea.sflag [#allocation3], 1
    %703 = vsyncpa %s702, 1
    %704 = vsyncpa [#allocation6], 1
    %705 = vsyncpa [#allocation9], 1
    %706 = vsyncpa [#allocation4], 1
    %s707 = scalar_lea.sflag [#allocation4], 1
    %708 = vsyncpa %s707, 1

</llo_original>
